<compile_context>
chip_gen: v7x
topology: tpu7x:2x2x1
jax: 0.10.0
libtpu: 0.0.40
codegen_flags: <defaults>
</compile_context>

<pallas_src>
import jax
import jax.numpy as jnp
import numpy as np
from jax import lax
from jax.experimental import pallas as pl
from jax.experimental.pallas import tpu as pltpu

_LANES = 128
_SUBLANES = 8


def _num_tensorcores() -> int:
    """2 on megacore chips (v7x/v5p/v4/v3), 1 on single-TC chips (v5e/v6e)."""
    try:
        kind = jax.devices()[0].device_kind.lower()
    except Exception:
        return 1
    if "lite" in kind or "v5e" in kind or "v6e" in kind:
        return 1
    if "v7" in kind or "v4" in kind or "v3" in kind or "v5" in kind:
        return 2
    return 1


def lambda_2_forward(lbd, N_i, M_i, *, tm=8192):
    """Pallas implementation of lambda_2.forward. Returns a scalar float32."""
    assert N_i.shape == M_i.shape
    total = int(np.prod(N_i.shape)) if np.prod(N_i.shape, dtype=np.int64) else 0
    if total == 0:
        return jnp.zeros((), jnp.float32)

    n_flat = jnp.ravel(N_i)
    m_flat = jnp.ravel(M_i)
    dt = jnp.promote_types(n_flat.dtype, m_flat.dtype)
    if not jnp.issubdtype(dt, jnp.floating):
        dt = jnp.float32
    n_flat = n_flat.astype(dt)
    m_flat = m_flat.astype(dt)

    itemsize = jnp.dtype(dt).itemsize
    sub_mult = max(_SUBLANES, 32 // itemsize)   # 8 f32 / 16 bf16 / 32 int8|fp8
    align = _LANES * sub_mult

    # Pad to a lane-dense, sublane-aligned slab.  Pad values make padded
    # elements contribute exactly 0 to the sum: relu((very_negative + lbd)/1).
    pad = (-total) % align
    if pad:
        n_flat = jnp.pad(n_flat, (0, pad),
                         constant_values=jnp.finfo(dt).min)
        m_flat = jnp.pad(m_flat, (0, pad),
                         constant_values=jnp.asarray(1, dt))
    rows_total = (total + pad) // _LANES

    n2 = n_flat.reshape(rows_total, _LANES)
    m2 = m_flat.reshape(rows_total, _LANES)

    # Row tile: dtype-correct sublane multiple, no bigger than the slab.
    tm_eff = min(int(tm), rows_total)
    tm_eff = max(sub_mult, (tm_eff // sub_mult) * sub_mult)

    num_blocks = -(-rows_total // tm_eff)
    ncores = _num_tensorcores()
    steps = -(-num_blocks // ncores)

    tail_rows = rows_total - (num_blocks - 1) * tm_eff    # static
    needs_tail_mask = tail_rows != tm_eff
    full_coverage = (ncores * steps == num_blocks)

    # Inner streaming chunk (rows): avoids a tm*512-byte VMEM temp.
    chunk = tm_eff
    for cand in (512, 256, 128, 64, 32, 16, 8):
        if cand <= tm_eff and tm_eff % cand == 0:
            chunk = cand
            break
    n_chunks = tm_eff // chunk

    def in_map(c, i):
        # Leftover (core, step) pairs re-read the last block; they are skipped
        # in-kernel, so at most one wasted block read per input per core.
        return (jnp.minimum(c * steps + i, num_blocks - 1), 0)

    def kernel(lbd_ref, n_ref, m_ref, out_ref, acc_ref):
        c = pl.program_id(0)
        i = pl.program_id(1)

        @pl.when(i == 0)
        def _init():
            acc_ref[...] = jnp.zeros_like(acc_ref)

        blk = c * steps + i                       # logical (unclamped) block id
        lbd_v = jnp.maximum(lbd_ref[0], 0.0)      # F.relu(lbd), scalar f32

        def accumulate(valid_rows):
            def chunk_body(g):
                if isinstance(g, int):
                    base = g * chunk
                else:
                    base = pl.multiple_of(g * chunk, chunk)
                n = n_ref[pl.ds(base, chunk), :].astype(jnp.float32)
                m = m_ref[pl.ds(base, chunk), :].astype(jnp.float32)
                # relu((N + Lbd) / M) -- reciprocal lands on the EUP slot
                obj = jnp.maximum(
                    (n + lbd_v) * pl.reciprocal(m, approx=False), 0.0)
                if valid_rows is not None:
                    # Tail block only: single row iota + one compare + select.
                    row = base + lax.broadcasted_iota(jnp.int32, obj.shape, 0)
                    obj = jnp.where(row < valid_rows, obj, 0.0)
                # (chunk,128) -> (8,128) vreg accumulator: VPU adds only.
                acc_ref[...] += obj.reshape(
                    chunk // _SUBLANES, _SUBLANES, _LANES).sum(axis=0)

            if n_chunks == 1:
                chunk_body(0)
            else:
                pl.loop(0, n_chunks)(chunk_body)

        if needs_tail_mask:
            # Interior blocks: bare compute, no iota / int math / select.
            @pl.when(blk < num_blocks - 1)
            def _interior():
                accumulate(None)

            # Last real block: static row threshold mask.
            @pl.when(blk == num_blocks - 1)
            def _tail():
                accumulate(tail_rows)
        elif not full_coverage:
            @pl.when(blk < num_blocks)
            def _all():
                accumulate(None)
        else:
            accumulate(None)

        @pl.when(i == pl.num_programs(1) - 1)
        def _finalize():
            out_ref[0, 0] = jnp.sum(acc_ref[...])

    bytes_accessed = total * 2 * itemsize + ncores * 4
    cost = pl.CostEstimate(flops=3 * total, transcendentals=total,
                           bytes_accessed=bytes_accessed)

    blk_bytes = tm_eff * _LANES * itemsize
    vmem_limit = int(min(max(32 << 20, 4 * blk_bytes + (8 << 20)), 96 << 20))

    out = pl.pallas_call(
        kernel,
        out_shape=jax.ShapeDtypeStruct((ncores, 1), jnp.float32),
        grid_spec=pltpu.PrefetchScalarGridSpec(
            num_scalar_prefetch=0,
            grid=(ncores, steps),
            in_specs=[
                pl.BlockSpec(memory_space=pltpu.MemorySpace.SMEM),  # lbd (1,)
                pl.BlockSpec((tm_eff, _LANES), in_map),             # N tile
                pl.BlockSpec((tm_eff, _LANES), in_map),             # M tile
            ],
            out_specs=pl.BlockSpec((1, 1), lambda c, i: (c, 0),
                                   memory_space=pltpu.MemorySpace.SMEM),
            scratch_shapes=[pltpu.VMEM((_SUBLANES, _LANES), jnp.float32)],
        ),
        # TODO(synk): on v7x, confirm the leading axis actually shards across
        # both TensorCores; if not, move to pltpu.CORE_PARALLEL / pl.core_map.
        compiler_params=pltpu.CompilerParams(
            dimension_semantics=("parallel", "arbitrary"),
            vmem_limit_bytes=vmem_limit,
        ),
        cost_estimate=cost,
    )(jnp.ravel(jnp.asarray(lbd)).astype(jnp.float32)[:1], n2, m2)

    # sum the per-core partials -> scalar
    return jnp.sum(out)


if __name__ == "__main__":
    key = jax.random.PRNGKey(0)
    k1, k2 = jax.random.split(key)

    # Shapes consistent with the module's generic tensor inputs.
    N_i = jax.random.normal(k1, (2, 4, 16, 16), dtype=jnp.float32)
    # keep M_i away from zero (denominator)
    M_i = jax.random.uniform(k2, (2, 4, 16, 16), dtype=jnp.float32,
                             minval=0.5, maxval=1.5)

    # parameter init matches reset_parameter(): fill_(0.001)
    lbd = jnp.full((1,), 0.001, dtype=jnp.float32)

    result = lambda_2_forward(lbd, N_i, M_i)
    result = jax.block_until_ready(result)

    # pure-JAX reference check
    Lbd = jnp.maximum(lbd[0], 0.0)
    ref = jnp.sum(jnp.maximum((N_i + Lbd) / M_i, 0.0))
    np.testing.assert_allclose(np.asarray(result), np.asarray(ref),
                               rtol=1e-5, atol=1e-5)

    print("KERNEL_OK")
</pallas_src>

<mosaic_0001>
module attributes {stable_mosaic.version = 11 : i64} {
  func.func @kernel(%arg0: i32, %arg1: i32, %arg2: memref<1xf32, #tpu.memory_space<smem>>, %arg3: memref<16x128xf32, #tpu.memory_space<vmem>>, %arg4: memref<16x128xf32, #tpu.memory_space<vmem>>, %arg5: memref<1x1xf32, #tpu.memory_space<smem>>, %arg6: memref<8x128xf32, #tpu.memory_space<vmem>>) attributes {dimension_semantics = [#tpu.dimension_semantics<parallel>, #tpu.dimension_semantics<arbitrary>], iteration_bounds = array<i64: 1, 1>, scalar_prefetch = 0 : i64, scratch_operands = 1 : i64, tpu.core_type = #tpu.core_type<tc>, window_params = [{transform_indices = @transform_0, window_bounds = array<i64: 1>}, {transform_indices = @transform_1, window_bounds = array<i64: 16, 128>}, {transform_indices = @transform_2, window_bounds = array<i64: 16, 128>}, {transform_indices = @transform_3, window_bounds = array<i64: 1, 1>}]} {
    %c0_i32 = arith.constant 0 : i32
    %0 = arith.cmpi eq, %arg1, %c0_i32 : i32
    %1 = arith.extui %0 : i1 to i32
    %c0_i32_0 = arith.constant 0 : i32
    %2 = arith.cmpi ne, %1, %c0_i32_0 : i32
    scf.if %2 {
      %cst_13 = arith.constant 0.000000e+00 : f32
      %21 = vector.broadcast %cst_13 : f32 to vector<8x128xf32>
      %c0_14 = arith.constant 0 : index
      %c0_15 = arith.constant 0 : index
      %22 = vector.load %arg6[%c0_14, %c0_15] : memref<8x128xf32, #tpu.memory_space<vmem>>, vector<8x128xf32>
      tpu.vector_store %arg6[%c0_14, %c0_15], %21 {strides = array<i32>} : memref<8x128xf32, #tpu.memory_space<vmem>>, vector<8x128xf32>,
    } else {
    }
    %c0 = arith.constant 0 : index
    %3 = memref.load %arg2[%c0] : memref<1xf32, #tpu.memory_space<smem>>
    %cst = arith.constant 0.000000e+00 : f32
    %4 = arith.maximumf %3, %cst : f32
    %c0_1 = arith.constant 0 : index
    %c0_2 = arith.constant 0 : index
    %5 = vector.load %arg3[%c0_1, %c0_2] : memref<16x128xf32, #tpu.memory_space<vmem>>, vector<16x128xf32>
    %c0_3 = arith.constant 0 : index
    %c0_4 = arith.constant 0 : index
    %6 = vector.load %arg4[%c0_3, %c0_4] : memref<16x128xf32, #tpu.memory_space<vmem>>, vector<16x128xf32>
    %7 = vector.broadcast %4 : f32 to vector<16x128xf32>
    %8 = arith.addf %5, %7 : vector<16x128xf32>
    %9 = tpu.reciprocal %6 : vector<16x128xf32> -> vector<16x128xf32>
    %10 = arith.mulf %8, %9 : vector<16x128xf32>
    %cst_5 = arith.constant 0.000000e+00 : f32
    %11 = vector.broadcast %cst_5 : f32 to vector<16x128xf32>
    %12 = arith.maximumf %10, %11 : vector<16x128xf32>
    %c0_6 = arith.constant 0 : index
    %c0_7 = arith.constant 0 : index
    %13 = vector.load %arg6[%c0_6, %c0_7] : memref<8x128xf32, #tpu.memory_space<vmem>>, vector<8x128xf32>
    %14 = vector.shape_cast %12 : vector<16x128xf32> to vector<2x8x128xf32>
    %cst_8 = arith.constant dense<0.000000e+00> : vector<8x128xf32>
    %15 = vector.multi_reduction <add>, %14, %cst_8 [0] : vector<2x8x128xf32> to vector<8x128xf32>
    %16 = arith.addf %13, %15 : vector<8x128xf32>
    %c0_9 = arith.constant 0 : index
    %c0_10 = arith.constant 0 : index
    %17 = vector.load %arg6[%c0_9, %c0_10] : memref<8x128xf32, #tpu.memory_space<vmem>>, vector<8x128xf32>
    tpu.vector_store %arg6[%c0_9, %c0_10], %16 {strides = array<i32>} : memref<8x128xf32, #tpu.memory_space<vmem>>, vector<8x128xf32>,
    %c0_i32_11 = arith.constant 0 : i32
    %18 = arith.cmpi eq, %arg1, %c0_i32_11 : i32
    %19 = arith.extui %18 : i1 to i32
    %c0_i32_12 = arith.constant 0 : i32
    %20 = arith.cmpi ne, %19, %c0_i32_12 : i32
    scf.if %20 {
      %c0_13 = arith.constant 0 : index
      %c0_14 = arith.constant 0 : index
      %21 = vector.load %arg6[%c0_13, %c0_14] : memref<8x128xf32, #tpu.memory_space<vmem>>, vector<8x128xf32>
      %22 = vector.shape_cast %21 : vector<8x128xf32> to vector<1x8x128xf32>
      %cst_15 = arith.constant dense<0.000000e+00> : vector<1xf32>
      %23 = vector.multi_reduction <add>, %22, %cst_15 [1, 2] : vector<1x8x128xf32> to vector<1xf32>
      %24 = vector.shape_cast %23 : vector<1xf32> to vector<1x1x1xf32>
      %25 = vector.extract %24[0, 0, 0] : f32 from vector<1x1x1xf32>
      %c0_16 = arith.constant 0 : index
      %c0_17 = arith.constant 0 : index
      %26 = memref.load %arg5[%c0_16, %c0_17] : memref<1x1xf32, #tpu.memory_space<smem>>
      memref.store %25, %arg5[%c0_16, %c0_17] : memref<1x1xf32, #tpu.memory_space<smem>>
    } else {
    }
    return
  }
  func.func @transform_0(%arg0: i32, %arg1: i32) -> i32 {
    %c0_i32 = arith.constant 0 : i32
    %c0_i32_0 = arith.constant 0 : i32
    return %c0_i32 : i32
  }
  func.func @transform_1(%arg0: i32, %arg1: i32) -> (i32, i32) {
    %c1_i32 = arith.constant 1 : i32
    %0 = arith.muli %arg0, %c1_i32 : i32
    %1 = arith.addi %0, %arg1 : i32
    %c0_i32 = arith.constant 0 : i32
    %2 = arith.minsi %1, %c0_i32 : i32
    %c0_i32_0 = arith.constant 0 : i32
    %c0_i32_1 = arith.constant 0 : i32
    return %2, %c0_i32_0 : i32, i32
  }
  func.func @transform_2(%arg0: i32, %arg1: i32) -> (i32, i32) {
    %c1_i32 = arith.constant 1 : i32
    %0 = arith.muli %arg0, %c1_i32 : i32
    %1 = arith.addi %0, %arg1 : i32
    %c0_i32 = arith.constant 0 : i32
    %2 = arith.minsi %1, %c0_i32 : i32
    %c0_i32_0 = arith.constant 0 : i32
    %c0_i32_1 = arith.constant 0 : i32
    return %2, %c0_i32_0 : i32, i32
  }
  func.func @transform_3(%arg0: i32, %arg1: i32) -> (i32, i32) {
    %c0_i32 = arith.constant 0 : i32
    %c0_i32_0 = arith.constant 0 : i32
    return %arg0, %c0_i32 : i32, i32
  }
}

</mosaic_0001>

<llo_original>
// kernel: tpu_custom_call.1
$region0: #{tpu_custom_call.1}
  #allocation0 [shape = 'u32[]', space=smem, size = 0x4, offset = 0x4, fixed_abs, tag = 'smem constant byte address 0x4 - core index']
  #allocation1 [shape = 'u32[144,128]{1,0:T(1,128)}', space=vmem, size = 0x12000, scoped, tag = 'internal scratch']
  #allocation2 [shape = 'f32[8,128]{1,0:T(8,128)}', space=vmem, size = 0x1000, scoped, tag = 'scratch operand']
  #allocation3 [shape = 'f32[1]{0:T(128)S(6)}', space=smem, size = 0x200, scoped, tag = 'scoped memory for tpu_custom_call.1']
  %s0 = inlined_call_operand.<no memory space> [shape: f32[1], index: 0, kind: input, shape index: {}]
  %s1 = inlined_call_operand.hbm [shape: f32[16,128], index: 1, kind: input, shape index: {}]
  %s2 = inlined_call_operand.hbm [shape: f32[16,128], index: 2, kind: input, shape index: {}]
  %s3 = inlined_call_operand.hbm [shape: f32[1,1], index: 3, kind: output, shape index: {}]
  %s4 = sld [smem:[#allocation0]]
  $region38: #{tpu_custom_call.1} parent=0
    _
  %s6 = ssub.s32 1, %s4
  %s7 = scalar_select 0, %s6, %s4
  %8 = sst [smem:[#allocation3]] %s0
  $region1: #{tpu_custom_call.1} parent=0
    #allocation4 [shape = 'u8[8192]{0}', space=vmem, size = 0x2000, scoped, tag = 'input window, operand 1, single buffered']
    #allocation5 [shape = 's32[1]{0}', space=sflag, size = 0x4, scoped, tag = 'scoped memory for tpu_custom_call.1']
    #allocation6 [shape = 's32[1]{0}', space=sflag, size = 0x4, scoped, tag = 'scoped memory for tpu_custom_call.1']
    #allocation7 [shape = 'u8[8192]{0}', space=vmem, size = 0x2000, scoped, tag = 'input window, operand 2, single buffered']
    #allocation8 [shape = 's32[1]{0}', space=sflag, size = 0x4, scoped, tag = 'scoped memory for tpu_custom_call.1']
    #allocation9 [shape = 'u8[512]{0}', space=smem, size = 0x200, scoped, tag = 'output window, operand 0, single buffered']
    %9 = vsyncpa [#allocation5], 0
    %10 = vsyncpa [#allocation8], 0
    %11 = vsyncpa [#allocation6], 0
    // Predicated region
    $region2: #{tpu_custom_call.1} parent=1 // pred_check
      _
    $region3: #{tpu_custom_call.1} parent=1 // pred_check_branch
      %13 = sbr.rel (0) target = $region5
    $region4: #{tpu_custom_call.1} parent=1 // pred_region
      _
    $region5: #{tpu_custom_call.1} parent=1 // pred_fallthru
      _
    // Predicated region
    $region6: #{tpu_custom_call.1} parent=1 // pred_check
      _
    $region7: #{tpu_custom_call.1} parent=1 // pred_check_branch
      %15 = sbr.rel (0) target = $region9
    $region8: #{tpu_custom_call.1} parent=1 // pred_region
      %s16 = sadd.s32 0, 0
      %p17 = scmp.lt.s32.totalorder %s16, 0
      %s18 = scalar_select %p17, %s16, 0
      %s19 = smul.u32 2, %s18
      %s21 = ssub.s32 256, 256
      %22 = vsyncadd [#allocation5], %s21
      %s23 = smul.addr %s19, 128
      %s24 = scalar_lea.hbm %s1, %s23
      %s25 = sshll.u32 [#allocation4], 4
      %s26 = int_to_ptr.vmem [resolvable:$true] %s25
      %31 = dma.hbm_to_vmem [thread:$0]  %s24, 256, %s26, [#allocation5], 128, 128, 8
    $region9: #{tpu_custom_call.1} parent=1 // pred_fallthru
      _
    // Predicated region
    $region10: #{tpu_custom_call.1} parent=1 // pred_check
      _
    $region11: #{tpu_custom_call.1} parent=1 // pred_check_branch
      %33 = sbr.rel (0) target = $region13
    $region12: #{tpu_custom_call.1} parent=1 // pred_region
      %s34 = sadd.s32 0, 0
      %p35 = scmp.lt.s32.totalorder %s34, 0
      %s36 = scalar_select %p35, %s34, 0
      %s37 = smul.u32 2, %s36
      %s39 = ssub.s32 256, 256
      %40 = vsyncadd [#allocation8], %s39
      %s41 = smul.addr %s37, 128
      %s42 = scalar_lea.hbm %s2, %s41
      %s43 = sshll.u32 [#allocation7], 4
      %s44 = int_to_ptr.vmem [resolvable:$true] %s43
      %49 = dma.hbm_to_vmem [thread:$0]  %s42, 256, %s44, [#allocation8], 128, 128, 8
    $region13: #{tpu_custom_call.1} parent=1 // pred_fallthru
      _
    // Predicated region
    $region14: #{tpu_custom_call.1} parent=1 // pred_check
      _
    $region15: #{tpu_custom_call.1} parent=1 // pred_check_branch
      %51 = sbr.rel (0) target = $region17
    $region16: #{tpu_custom_call.1} parent=1 // pred_region
      %52 = dma.done [#allocation5], 256
    $region17: #{tpu_custom_call.1} parent=1 // pred_fallthru
      _
    // Predicated region
    $region18: #{tpu_custom_call.1} parent=1 // pred_check
      _
    $region19: #{tpu_custom_call.1} parent=1 // pred_check_branch
      %54 = sbr.rel (0) target = $region21
    $region20: #{tpu_custom_call.1} parent=1 // pred_region
      %55 = dma.done [#allocation8], 256
    $region21: #{tpu_custom_call.1} parent=1 // pred_fallthru
      _
    %s56 = sadd.s32 0, 0
    %p57 = scmp.lt.s32.totalorder %s56, 0
    %s58 = scalar_select %p57, %s56, 0
    %s59 = smul.u32 2, %s58
    %s60 = sadd.s32 0, 0
    %p61 = scmp.lt.s32.totalorder %s60, 0
    %s62 = scalar_select %p61, %s60, 0
    %s63 = smul.u32 2, %s62
    %p64 = scmp.eq.s32.totalorder 0, 0
    // Predicated region
    $region22: #{tpu_custom_call.1} parent=1 // pred_check
      %p65 = pneg %p64
    $region23: #{tpu_custom_call.1} parent=1 // pred_check_branch
      %67 = sbr.rel (%p65) target = $region25
    $region24: #{tpu_custom_call.1} parent=1 // pred_region
      %68 = vst [vmem:[#allocation2] sm:$0xff] 0.0
    $region25: #{tpu_custom_call.1} parent=1 // pred_fallthru
      _
    %s69 = sld [smem:[#allocation3]]
    %s70 = smax.f32 %s69, 0.0
    %v71 = vld [vmem:[#allocation4] sm:$0xff]
    %v72 = vld [vmem:[#allocation4 + $0x8] sm:$0xff]
    %v73 = vld [vmem:[#allocation7] sm:$0xff]
    %v74 = vld [vmem:[#allocation7 + $0x8] sm:$0xff]
    %v75 = vstv %s70
    %v76 = vadd.f32 %v71, %v75
    %v77 = vadd.f32 %v72, %v75
    %v78 = vrcp.pop %v73
    %v79 = vrcp.pop %v74
    %v80 = vmul.f32 %v76, %v78
    %v81 = vmul.f32 %v77, %v79
    %v82 = vmax.f32 %v80, 0.0
    %v83 = vmax.f32 %v81, 0.0
    %v84 = vld [vmem:[#allocation2] sm:$0xff]
    %v85 = vadd.f32 %v82, %v83
    %v86 = vadd.f32 %v84, %v85
    %87 = vst [vmem:[#allocation2] sm:$0xff] %v86
    // Predicated region
    $region26: #{tpu_custom_call.1} parent=1 // pred_check
      %p88 = pneg %p64
    $region27: #{tpu_custom_call.1} parent=1 // pred_check_branch
      %90 = sbr.rel (%p88) target = $region29
    $region28: #{tpu_custom_call.1} parent=1 // pred_region
      %v91 = vld [vmem:[#allocation2] sm:$0xff]
      %92 = vadd.xlane.f32.xlu0 %v91
      %v93 = vpop.xlane.xlu0 %92
      %v94 = vrot.slane %v93, 4
      %v95 = vadd.f32 %v93, %v94
      %v96 = vrot.slane %v95, 2
      %v97 = vadd.f32 %v95, %v96
      %v98 = vrot.slane %v97, 1
      %v99 = vadd.f32 %v97, %v98
      %s100 = vtos %v99
      %s101 = scalar_lea.smem [#allocation9], 0
      %102 = sst [smem:[%s101]] %s100
    $region29: #{tpu_custom_call.1} parent=1 // pred_fallthru
      _
    // Predicated region
    $region30: #{tpu_custom_call.1} parent=1 // pred_check
      _
    $region31: #{tpu_custom_call.1} parent=1 // pred_check_branch
      %104 = sbr.rel (0) target = $region33
    $region32: #{tpu_custom_call.1} parent=1 // pred_region
      %s106 = ssub.s32 16, 16
      %107 = vsyncadd [#allocation6], %s106
      %110 = dma.smem_to_hbm [#allocation9], 16, %s3, [#allocation6]
    $region33: #{tpu_custom_call.1} parent=1 // pred_fallthru
      _
    // Predicated region
    $region34: #{tpu_custom_call.1} parent=1 // pred_check
      _
    $region35: #{tpu_custom_call.1} parent=1 // pred_check_branch
      %112 = sbr.rel (0) target = $region37
    $region36: #{tpu_custom_call.1} parent=1 // pred_region
      %113 = dma.done [#allocation6], 16
    $region37: #{tpu_custom_call.1} parent=1 // pred_fallthru
      _
    %114 = sfence
    %115 = vsyncpa [#allocation5], 1
    %116 = vsyncpa [#allocation8], 1
    %117 = vsyncpa [#allocation6], 1

</llo_original>
